<compile_context>
chip_gen: v6e
topology: v6e:2x2x1
jax: 0.10.0
libtpu: 0.0.40
codegen_flags: <defaults>
</compile_context>

<pallas_src>
import functools

import jax
import jax.numpy as jnp
from jax.experimental import pallas as pl
from jax.experimental.pallas import tpu as pltpu


def _tpu_generation():
    """Best-effort TPU generation number (4, 5, 6, 7, ...). Defaults to 6."""
    try:
        kind = jax.devices()[0].device_kind.lower()
    except Exception:
        return 6
    for gen in (7, 6, 5, 4):
        if f"v{gen}" in kind or f"tpu{gen}" in kind:
            return gen
    return 6


def _vmem_physical_bytes(gen):
    """Physical per-core VMEM capacity, from the runtime if available."""
    try:
        cap = int(getattr(pltpu.get_tpu_info(), "vmem_capacity_bytes", 0))
        if cap > 0:
            return cap
    except Exception:
        pass
    # v7x: 64 MiB per TensorCore; v4/v5e/v6e: 128 MiB.
    return (64 if gen >= 7 else 128) * (1 << 20)


def _layernorm_kernel(x_ref, w_ref, b_ref, o_ref, *, eps, bf16_affine):
    # x_ref / o_ref: (Nb, C, T);  w_ref / b_ref: (C, 1)
    # Moments are always accumulated in f32 (two-pass, numerically stable,
    # matches torch.var(unbiased=False)).
    x = x_ref[...]
    xf = x.astype(jnp.float32)
    mean = jnp.mean(xf, axis=1, keepdims=True)           # (Nb, 1, T)
    xc = xf - mean
    var = jnp.mean(xc * xc, axis=1, keepdims=True)       # biased variance
    inv = jax.lax.rsqrt(var + eps)                       # (Nb, 1, T)
    if bf16_affine:
        # v6e/v7x only: keep the full-block affine chain in bf16.  Halves the
        # VALU ops per vreg and drops a full-size f32 temporary; moments stay
        # in f32 so accuracy is preserved.  Gated off on v5e (no bf16 VALU).
        shift = mean.astype(jnp.bfloat16)
        scale = inv.astype(jnp.bfloat16)
        w = w_ref[...].astype(jnp.bfloat16)[None, :, :]
        b = b_ref[...].astype(jnp.bfloat16)[None, :, :]
        o_ref[...] = (((x - shift) * scale) * w + b).astype(o_ref.dtype)
    else:
        w = w_ref[...].astype(jnp.float32)[None, :, :]
        b = b_ref[...].astype(jnp.float32)[None, :, :]
        o_ref[...] = ((xc * inv) * w + b).astype(o_ref.dtype)


def _choose_tiling(N, C, HW, itemsize, gen, vmem_limit_bytes):
    """Pick (Nb, T): batch rows folded per block and the lane tile along HW.

    Accounts for the REAL per-step VMEM footprint: 2 buffers x (input +
    output) in the activation dtype, ~2 full-block f32 temporaries from the
    in-kernel upcast, and the lane-padded (C,1)->(C_pad,128) weight/bias
    double buffers.  Targets the largest block that fits ~75% of the scoped
    limit (soft-capped at ~8 MiB of native-dtype input per block so pipeline
    ramp-up/down stays cheap) -- LayerNorm is purely HBM-bound, so big,
    lane-dense blocks are the only lever.
    """
    usable = int(vmem_limit_bytes * 0.75)
    c_pad = ((C + 7) // 8) * 8
    wb_bytes = 2 * 2 * c_pad * 128 * 4           # weight+bias, double-buffered, lane-padded
    budget = max(usable - wb_bytes, 1 << 20)

    # Bytes per lane-column of one block: 2x(in+out) native dtype + ~2 f32 temps.
    per_col = C * (4 * itemsize + 8)
    max_cols = max(budget // per_col, 128)        # total Nb*T columns that fit
    soft_cap = max((8 << 20) // max(C * itemsize, 1), 128)
    max_cols = min(max_cols, soft_cap)

    if HW > max_cols:
        nb = 1
        cap = max((max_cols // 128) * 128, 128)
        t = cap
        for cand in range(cap, 127, -128):        # prefer a divisor of HW: no masked tail
            if HW % cand == 0:
                t = cand
                break
    else:
        t = HW                                    # full extent: legal block for any HW
        nb = min(N, max(1, max_cols // max(HW, 1)))
        while nb > 1 and N % nb != 0:             # prefer a divisor of N: no masked tail block
            nb -= 1

    # v7x has 2 TensorCores: make sure >= 2 grid steps exist on a parallel
    # axis whenever the problem allows it, so the second core isn't idle.
    if gen >= 7 and pl.cdiv(N, nb) * pl.cdiv(HW, t) < 2:
        if N >= 2:
            nb = max(1, N // 2)
        elif HW >= 256 and HW % 256 == 0:
            t = HW // 2
    return nb, t


def layernorm_nchw(x, weight, bias, eps=1e-6):
    """Channel-wise LayerNorm over dim=1 of an NCHW tensor (PyTorch module semantics)."""
    N, C, H, W = x.shape
    HW = H * W
    x_flat = x.reshape(N, C, HW)
    w2 = weight.reshape(C, 1)
    b2 = bias.reshape(C, 1)

    gen = _tpu_generation()
    phys = _vmem_physical_bytes(gen)
    # Explicit scoped-VMEM limit (defaults are only 16/32 MiB); leave headroom
    # below physical capacity for compiler-internal scratch.
    vmem_limit = max(32 << 20, min(int(phys * 0.75), phys - (8 << 20)))

    itemsize = jnp.dtype(x.dtype).itemsize
    Nb, T = _choose_tiling(N, C, HW, itemsize, gen, vmem_limit)
    grid = (pl.cdiv(N, Nb), pl.cdiv(HW, T))

    bf16_affine = (x.dtype == jnp.bfloat16) and gen >= 6

    out = pl.pallas_call(
        functools.partial(_layernorm_kernel, eps=eps, bf16_affine=bf16_affine),
        out_shape=jax.ShapeDtypeStruct((N, C, HW), x.dtype),
        grid_spec=pltpu.PrefetchScalarGridSpec(
            num_scalar_prefetch=0,
            grid=grid,
            in_specs=[
                pl.BlockSpec((Nb, C, T), lambda n, h: (n, 0, h)),
                pl.BlockSpec((C, 1), lambda n, h: (0, 0)),   # constant index: no re-DMA per step
                pl.BlockSpec((C, 1), lambda n, h: (0, 0)),
            ],
            out_specs=pl.BlockSpec((Nb, C, T), lambda n, h: (n, 0, h)),
        ),
        compiler_params=pltpu.CompilerParams(
            # Every grid step is independent per-pixel work: let the v7x
            # megacore scheduler shard either axis; no-op on v5e/v6e.
            dimension_semantics=("parallel", "parallel"),
            vmem_limit_bytes=vmem_limit,
        ),
    )(x_flat, w2, b2)

    return out.reshape(N, C, H, W)


def layernorm_ref(x, weight, bias, eps=1e-6):
    mean = jnp.mean(x, axis=1, keepdims=True)
    var = jnp.mean((x - mean) ** 2, axis=1, keepdims=True)
    x_hat = (x - mean) / jnp.sqrt(var + eps)
    return weight.reshape(1, -1, 1, 1) * x_hat + bias.reshape(1, -1, 1, 1)


if __name__ == "__main__":
    key = jax.random.PRNGKey(0)
    kx, kw, kb = jax.random.split(key, 3)

    N, C, H, W = 2, 4, 16, 16
    x = jax.random.normal(kx, (N, C, H, W), dtype=jnp.float32)

    # Module __init__ uses ones/zeros of shape (C,); perturb deterministically
    # so the affine path is actually exercised.
    weight = jnp.ones((C,), jnp.float32) + 0.1 * jax.random.normal(kw, (C,), jnp.float32)
    bias = jnp.zeros((C,), jnp.float32) + 0.1 * jax.random.normal(kb, (C,), jnp.float32)

    # f32 path (matches the PyTorch module's default eps=1e-6).
    out = jax.block_until_ready(layernorm_nchw(x, weight, bias, eps=1e-6))
    ref = layernorm_ref(x, weight, bias, eps=1e-6)
    assert out.shape == (N, C, H, W)
    assert jnp.allclose(out, ref, atol=1e-5, rtol=1e-5), "f32 mismatch vs reference"

    # bf16 activations exercise the bf16-affine path on v6e/v7x (f32 on v5e).
    xb = x.astype(jnp.bfloat16)
    out_b = jax.block_until_ready(layernorm_nchw(xb, weight, bias, eps=1e-6))
    ref_b = layernorm_ref(xb.astype(jnp.float32), weight, bias, eps=1e-6)
    assert out_b.dtype == jnp.bfloat16
    assert jnp.allclose(out_b.astype(jnp.float32), ref_b, atol=1e-1, rtol=5e-2), (
        "bf16 mismatch vs reference")

    print("KERNEL_OK")
</pallas_src>

<mosaic_0001>
module attributes {stable_mosaic.version = 11 : i64} {
  func.func @_layernorm_kernel(%arg0: i32, %arg1: i32, %arg2: memref<2x4x256xf32, #tpu.memory_space<vmem>>, %arg3: memref<4x1xf32, #tpu.memory_space<vmem>>, %arg4: memref<4x1xf32, #tpu.memory_space<vmem>>, %arg5: memref<2x4x256xf32, #tpu.memory_space<vmem>>) attributes {dimension_semantics = [#tpu.dimension_semantics<parallel>, #tpu.dimension_semantics<parallel>], iteration_bounds = array<i64: 1, 1>, scalar_prefetch = 0 : i64, scratch_operands = 0 : i64, tpu.core_type = #tpu.core_type<tc>, window_params = [{transform_indices = @transform_0, window_bounds = array<i64: 2, 4, 256>}, {pipeline_mode = #tpu.pipeline_mode<synchronous>, transform_indices = @transform_1, window_bounds = array<i64: 4, 1>}, {pipeline_mode = #tpu.pipeline_mode<synchronous>, transform_indices = @transform_2, window_bounds = array<i64: 4, 1>}, {transform_indices = @transform_3, window_bounds = array<i64: 2, 4, 256>}]} {
    %c0 = arith.constant 0 : index
    %c0_0 = arith.constant 0 : index
    %c0_1 = arith.constant 0 : index
    %0 = vector.load %arg2[%c0, %c0_0, %c0_1] : memref<2x4x256xf32, #tpu.memory_space<vmem>>, vector<2x4x256xf32>
    %cst = arith.constant dense<0.000000e+00> : vector<2x256xf32>
    %1 = vector.multi_reduction <add>, %0, %cst [1] : vector<2x4x256xf32> to vector<2x256xf32>
    %2 = vector.shape_cast %1 : vector<2x256xf32> to vector<2x1x256xf32>
    %cst_2 = arith.constant 4.000000e+00 : f32
    %3 = vector.broadcast %cst_2 : f32 to vector<2x1x256xf32>
    %4 = arith.divf %2, %3 : vector<2x1x256xf32>
    %5 = vector.broadcast %4 : vector<2x1x256xf32> to vector<2x4x256xf32>
    %6 = arith.subf %0, %5 : vector<2x4x256xf32>
    %7 = arith.mulf %6, %6 : vector<2x4x256xf32>
    %cst_3 = arith.constant dense<0.000000e+00> : vector<2x256xf32>
    %8 = vector.multi_reduction <add>, %7, %cst_3 [1] : vector<2x4x256xf32> to vector<2x256xf32>
    %9 = vector.shape_cast %8 : vector<2x256xf32> to vector<2x1x256xf32>
    %cst_4 = arith.constant 4.000000e+00 : f32
    %10 = vector.broadcast %cst_4 : f32 to vector<2x1x256xf32>
    %11 = arith.divf %9, %10 : vector<2x1x256xf32>
    %cst_5 = arith.constant 9.99999997E-7 : f32
    %12 = vector.broadcast %cst_5 : f32 to vector<2x1x256xf32>
    %13 = arith.addf %11, %12 : vector<2x1x256xf32>
    %14 = math.rsqrt %13 : vector<2x1x256xf32>
    %c0_6 = arith.constant 0 : index
    %c0_7 = arith.constant 0 : index
    %15 = vector.load %arg3[%c0_6, %c0_7] : memref<4x1xf32, #tpu.memory_space<vmem>>, vector<4x1xf32>
    %16 = vector.shape_cast %15 : vector<4x1xf32> to vector<1x4x1xf32>
    %c0_8 = arith.constant 0 : index
    %c0_9 = arith.constant 0 : index
    %17 = vector.load %arg4[%c0_8, %c0_9] : memref<4x1xf32, #tpu.memory_space<vmem>>, vector<4x1xf32>
    %18 = vector.shape_cast %17 : vector<4x1xf32> to vector<1x4x1xf32>
    %19 = vector.broadcast %14 : vector<2x1x256xf32> to vector<2x4x256xf32>
    %20 = arith.mulf %6, %19 : vector<2x4x256xf32>
    %21 = vector.broadcast %16 : vector<1x4x1xf32> to vector<2x4x256xf32>
    %22 = arith.mulf %20, %21 : vector<2x4x256xf32>
    %23 = vector.broadcast %18 : vector<1x4x1xf32> to vector<2x4x256xf32>
    %24 = arith.addf %22, %23 : vector<2x4x256xf32>
    %c0_10 = arith.constant 0 : index
    %c0_11 = arith.constant 0 : index
    %c0_12 = arith.constant 0 : index
    %25 = vector.load %arg5[%c0_10, %c0_11, %c0_12] : memref<2x4x256xf32, #tpu.memory_space<vmem>>, vector<2x4x256xf32>
    tpu.vector_store %arg5[%c0_10, %c0_11, %c0_12], %24 {strides = array<i32>} : memref<2x4x256xf32, #tpu.memory_space<vmem>>, vector<2x4x256xf32>,
    return
  }
  func.func @transform_0(%arg0: i32, %arg1: i32) -> (i32, i32, i32) {
    %c0_i32 = arith.constant 0 : i32
    %c0_i32_0 = arith.constant 0 : i32
    return %arg0, %c0_i32, %arg1 : i32, i32, i32
  }
  func.func @transform_1(%arg0: i32, %arg1: i32) -> (i32, i32) {
    %c0_i32 = arith.constant 0 : i32
    %c0_i32_0 = arith.constant 0 : i32
    %c0_i32_1 = arith.constant 0 : i32
    return %c0_i32, %c0_i32_0 : i32, i32
  }
  func.func @transform_2(%arg0: i32, %arg1: i32) -> (i32, i32) {
    %c0_i32 = arith.constant 0 : i32
    %c0_i32_0 = arith.constant 0 : i32
    %c0_i32_1 = arith.constant 0 : i32
    return %c0_i32, %c0_i32_0 : i32, i32
  }
  func.func @transform_3(%arg0: i32, %arg1: i32) -> (i32, i32, i32) {
    %c0_i32 = arith.constant 0 : i32
    %c0_i32_0 = arith.constant 0 : i32
    return %arg0, %c0_i32, %arg1 : i32, i32, i32
  }
}

</mosaic_0001>

<llo_original>
// kernel: tpu_custom_call.1
$region0: #{tpu_custom_call.1}
  #allocation0 [shape = 'u32[]', space=smem, size = 0x4, offset = 0x4, fixed_abs, tag = 'smem constant byte address 0x4 - core index']
  #allocation1 [shape = 'u32[144,128]{1,0:T(1,128)}', space=vmem, size = 0x12000, scoped, tag = 'internal scratch']
  %s0 = inlined_call_operand.hbm [shape: f32[2,4,256], index: 0, kind: input, shape index: {}]
  %s1 = inlined_call_operand.vmem [shape: f32[4,1], index: 1, kind: input, shape index: {}]
  %s2 = inlined_call_operand.vmem [shape: f32[4,1], index: 2, kind: input, shape index: {}]
  %s3 = inlined_call_operand.hbm [shape: f32[2,4,256], index: 3, kind: output, shape index: {}]
  %s4 = sld [smem:[#allocation0]]
  $region26: #{tpu_custom_call.1} parent=0
    _
  %s6 = ssub.s32 1, %s4
  %s7 = scalar_select 0, %s6, %s4
  $region1: #{tpu_custom_call.1} parent=0
    #allocation2 [shape = 'u8[8192]{0}', space=vmem, size = 0x2000, scoped, tag = 'input window, operand 0, single buffered']
    #allocation3 [shape = 's32[1]{0}', space=sflag, size = 0x4, scoped, tag = 'scoped memory for tpu_custom_call.1']
    #allocation4 [shape = 's32[1]{0}', space=sflag, size = 0x4, scoped, tag = 'scoped memory for tpu_custom_call.1']
    #allocation5 [shape = 'u8[8192]{0}', space=vmem, size = 0x2000, scoped, tag = 'output window, operand 0, single buffered']
    %8 = vsyncpa [#allocation3], 0
    %9 = vsyncpa [#allocation4], 0
    // Predicated region
    $region2: #{tpu_custom_call.1} parent=1 // pred_check
      _
    $region3: #{tpu_custom_call.1} parent=1 // pred_check_branch
      %11 = sbr.rel (0) target = $region5
    $region4: #{tpu_custom_call.1} parent=1 // pred_region
      %s13 = ssub.s32 256, 256
      %14 = vsyncadd [#allocation3], %s13
      %s15 = sshll.u32 [#allocation2], 4
      %s16 = int_to_ptr.vmem [resolvable:$true] %s15
      %21 = dma.hbm_to_vmem [thread:$0]  %s0, 256, %s16, [#allocation3], 128, 128, 8
    $region5: #{tpu_custom_call.1} parent=1 // pred_fallthru
      _
    // Predicated region
    $region6: #{tpu_custom_call.1} parent=1 // pred_check
      _
    $region7: #{tpu_custom_call.1} parent=1 // pred_check_branch
      %23 = sbr.rel (0) target = $region9
    $region8: #{tpu_custom_call.1} parent=1 // pred_region
      _
    $region9: #{tpu_custom_call.1} parent=1 // pred_fallthru
      _
    // Predicated region
    $region10: #{tpu_custom_call.1} parent=1 // pred_check
      _
    $region11: #{tpu_custom_call.1} parent=1 // pred_check_branch
      %25 = sbr.rel (0) target = $region13
    $region12: #{tpu_custom_call.1} parent=1 // pred_region
      _
    $region13: #{tpu_custom_call.1} parent=1 // pred_fallthru
      _
    // Predicated region
    $region14: #{tpu_custom_call.1} parent=1 // pred_check
      _
    $region15: #{tpu_custom_call.1} parent=1 // pred_check_branch
      %27 = sbr.rel (0) target = $region17
    $region16: #{tpu_custom_call.1} parent=1 // pred_region
      %28 = dma.done [#allocation3], 256
    $region17: #{tpu_custom_call.1} parent=1 // pred_fallthru
      _
    %v29 = vld [vmem:[#allocation2] sm:$0xff]
    %v30 = vld [vmem:[#allocation2 + $0x8] sm:$0xff]
    %v33 = vcombine.high %v29, %v29
    %v34 = vcombine.high %v30, %v30
    %vm37 = vcmask 1043456
    %v38 = vsel %vm37, %v29, 0.0
    %v39 = vrot.slane %v38, 4
    %v40 = vadd.f32 %v38, %v39
    %v41 = vrot.slane %v40, 2
    %v42 = vadd.f32 %v40, %v41
    %v43 = vrot.slane %v42, 1
    %v44 = vadd.f32 %v42, %v43
    %v45 = vsel %vm37, %v33, 0.0
    %v46 = vrot.slane %v45, 4
    %v47 = vadd.f32 %v45, %v46
    %v48 = vrot.slane %v47, 2
    %v49 = vadd.f32 %v47, %v48
    %v50 = vrot.slane %v49, 1
    %v51 = vadd.f32 %v49, %v50
    %v52 = vsel %vm37, %v30, 0.0
    %v53 = vrot.slane %v52, 4
    %v54 = vadd.f32 %v52, %v53
    %v55 = vrot.slane %v54, 2
    %v56 = vadd.f32 %v54, %v55
    %v57 = vrot.slane %v56, 1
    %v58 = vadd.f32 %v56, %v57
    %v59 = vsel %vm37, %v34, 0.0
    %v60 = vrot.slane %v59, 4
    %v61 = vadd.f32 %v59, %v60
    %v62 = vrot.slane %v61, 2
    %v63 = vadd.f32 %v61, %v62
    %v64 = vrot.slane %v63, 1
    %v65 = vadd.f32 %v63, %v64
    %v66 = vrcp.pop 4.0
    %v67 = vmul.f32 %v44, %v66
    %v68 = vmul.f32 %v51, %v66
    %v69 = vmul.f32 %v58, %v66
    %v70 = vmul.f32 %v65, %v66
    %v75 = vcombine.low %v67, %v68
    %v76 = vcombine.low %v69, %v70
    %v79 = vsub.f32 %v29, %v75
    %v80 = vsub.f32 %v30, %v76
    %v81 = vmul.f32 %v79, %v79
    %v82 = vmul.f32 %v80, %v80
    %v85 = vcombine.high %v81, %v81
    %v86 = vcombine.high %v82, %v82
    %v89 = vsel %vm37, %v81, 0.0
    %v90 = vrot.slane %v89, 4
    %v91 = vadd.f32 %v89, %v90
    %v92 = vrot.slane %v91, 2
    %v93 = vadd.f32 %v91, %v92
    %v94 = vrot.slane %v93, 1
    %v95 = vadd.f32 %v93, %v94
    %v96 = vsel %vm37, %v85, 0.0
    %v97 = vrot.slane %v96, 4
    %v98 = vadd.f32 %v96, %v97
    %v99 = vrot.slane %v98, 2
    %v100 = vadd.f32 %v98, %v99
    %v101 = vrot.slane %v100, 1
    %v102 = vadd.f32 %v100, %v101
    %v103 = vsel %vm37, %v82, 0.0
    %v104 = vrot.slane %v103, 4
    %v105 = vadd.f32 %v103, %v104
    %v106 = vrot.slane %v105, 2
    %v107 = vadd.f32 %v105, %v106
    %v108 = vrot.slane %v107, 1
    %v109 = vadd.f32 %v107, %v108
    %v110 = vsel %vm37, %v86, 0.0
    %v111 = vrot.slane %v110, 4
    %v112 = vadd.f32 %v110, %v111
    %v113 = vrot.slane %v112, 2
    %v114 = vadd.f32 %v112, %v113
    %v115 = vrot.slane %v114, 1
    %v116 = vadd.f32 %v114, %v115
    %v117 = vmul.f32 %v95, %v66
    %v118 = vmul.f32 %v102, %v66
    %v119 = vmul.f32 %v109, %v66
    %v120 = vmul.f32 %v116, %v66
    %v121 = vadd.f32 %v117, 1e-06
    %v122 = vadd.f32 %v118, 1e-06
    %v123 = vadd.f32 %v119, 1e-06
    %v124 = vadd.f32 %v120, 1e-06
    %v125 = vrsqrt.pop %v121
    %v126 = vrsqrt.pop %v122
    %v127 = vrsqrt.pop %v123
    %v128 = vrsqrt.pop %v124
    %v129 = vld [vmem:[%s1] sm:$0xf]
    %v130 = vld [vmem:[%s2] sm:$0xf]
    %v135 = vcombine.low %v125, %v126
    %v136 = vcombine.low %v127, %v128
    %v139 = vmul.f32 %v79, %v135
    %v140 = vmul.f32 %v80, %v136
    %142 = vset.pattern.permute.xlu0 0
    %143 = vperm.xlu0 %142, %v129
    %v144 = vpop.permute.xlu0 %143
    %v146 = vunpack.c.l.s4 839922192
    %v147 = vunpack.c.0.s8 %v146
    %v148 = vlaneseq
    %v149 = vshrl.u32 %v148, 7
    %v150 = vsub.s32 %v147, %v149
    %v151 = vrot.slane %v144, %v150
    %v153 = vmul.f32 %v139, %v151
    %v154 = vmul.f32 %v140, %v151
    %156 = vset.pattern.permute.xlu0 0
    %157 = vperm.xlu0 %156, %v130
    %v158 = vpop.permute.xlu0 %157
    %v160 = vunpack.c.l.s4 839922192
    %v161 = vunpack.c.0.s8 %v160
    %v162 = vlaneseq
    %v163 = vshrl.u32 %v162, 7
    %v164 = vsub.s32 %v161, %v163
    %v165 = vrot.slane %v158, %v164
    %v167 = vadd.f32 %v153, %v165
    %v168 = vadd.f32 %v154, %v165
    %169 = vst [vmem:[#allocation5] sm:$0xff] %v167
    %170 = vst [vmem:[#allocation5 + $0x8] sm:$0xff] %v168
    // Predicated region
    $region18: #{tpu_custom_call.1} parent=1 // pred_check
      _
    $region19: #{tpu_custom_call.1} parent=1 // pred_check_branch
      %172 = sbr.rel (0) target = $region21
    $region20: #{tpu_custom_call.1} parent=1 // pred_region
      %s174 = ssub.s32 256, 256
      %175 = vsyncadd [#allocation4], %s174
      %s176 = sshll.u32 [#allocation5], 4
      %s177 = int_to_ptr.vmem [resolvable:$true] %s176
      %182 = dma.vmem_to_hbm [thread:$0]  %s177, 256, %s3, [#allocation4], 128, 128, 8
    $region21: #{tpu_custom_call.1} parent=1 // pred_fallthru
      _
    // Predicated region
    $region22: #{tpu_custom_call.1} parent=1 // pred_check
      _
    $region23: #{tpu_custom_call.1} parent=1 // pred_check_branch
      %184 = sbr.rel (0) target = $region25
    $region24: #{tpu_custom_call.1} parent=1 // pred_region
      %185 = dma.done [#allocation4], 256
    $region25: #{tpu_custom_call.1} parent=1 // pred_fallthru
      _
    %186 = vsyncpa [#allocation3], 1
    %187 = vsyncpa [#allocation4], 1

</llo_original>
